<compile_context>
chip_gen: v7x
topology: tpu7x:2x2x1
jax: 0.10.0
libtpu: 0.0.40
codegen_flags: <defaults>
</compile_context>

<pallas_src>
import jax
import jax.numpy as jnp
import numpy as np
from jax.experimental import pallas as pl
from jax.experimental.pallas import tpu as pltpu

VMEM = pltpu.MemorySpace.VMEM
SMEM = pltpu.MemorySpace.SMEM


# ---------------------------------------------------------------------------
# Fused kernel: edge MLPs + block-stacked incidence matmuls + LN/SiLU/Euler
# ---------------------------------------------------------------------------
def fused_update_kernel(ei_en_ref, ei_ne_ref, attr_ref, u_ref,
                        w1_ref, w2_ref, eb_ref, w_ref, azw_ref, ln_ref,
                        scal_ref, out_ref):
    E = attr_ref.shape[0]
    N, H = out_ref.shape
    E2, N2 = 2 * E, 2 * N

    # ---- fused two-head edge MLP: one fc1 + tanh, one block-diagonal fc2 ----
    a = attr_ref[...]
    h = jnp.tanh(jnp.dot(a, w1_ref[...], preferred_element_type=jnp.float32)
                 + eb_ref[0:1, :])                                    # (E, 32)
    d = (jnp.dot(h, w2_ref[...], preferred_element_type=jnp.float32)
         + eb_ref[1:2, 0:2] + 1e-6)                                   # (E, 2)
    # stacked per-edge operator values: top block 1/delta_x (D), bottom delta_z (Az)
    v2 = jnp.concatenate([1.0 / d[:, 0:1], d[:, 1:2]], axis=0)        # (2E, 1)

    # ---- block-stacked incidence one-hots (replace sparse COO / scatter) ----
    row_e = ei_en_ref[...][:, 0:1]                                    # (E,1) source
    col_n = ei_ne_ref[...][1:2, :]                                    # (1,E) target
    row2 = jnp.concatenate([row_e, row_e + N], axis=0)                # (2E,1)
    col2 = jnp.concatenate([col_n, col_n + N], axis=1)                # (1,2E)
    s_row2 = (jax.lax.broadcasted_iota(jnp.int32, (E2, N2), 1) == row2
              ).astype(jnp.float32)                                   # (2E,2N)
    s_col2T = (jax.lax.broadcasted_iota(jnp.int32, (N2, E2), 0) == col2
               ).astype(jnp.float32)                                  # (2N,2E)

    # diag values = scatter_add of v over target node, with zero->1 guard
    diag2 = jnp.dot(s_col2T, v2, preferred_element_type=jnp.float32)  # (2N,1)
    diag2 = diag2 + (diag2 == 0.0).astype(jnp.float32)

    dt = scal_ref[0]   # delta_t
    dg = scal_ref[1]   # delta_g
    u = u_ref[...]

    # uw^2
    uw = jnp.dot(u, w_ref[...], preferred_element_type=jnp.float32)
    uw2 = uw * uw

    # one gather + one scatter matmul applies BOTH operators:
    #   rows 0:N   -> D-off-diag  @ uw2
    #   rows N:2N  -> Az-off-diag @ u
    cat = jnp.concatenate([uw2, u], axis=0)                               # (2N,H)
    gath = jnp.dot(s_row2, cat, preferred_element_type=jnp.float32)       # (2E,H)
    sc = jnp.dot(s_col2T, v2 * gath, preferred_element_type=jnp.float32)  # (2N,H)

    d_app = sc[0:N, :] + diag2[0:N, :] * uw2          # D @ uw^2
    az_app = sc[N:N2, :] + diag2[N:N2, :] * u         # Az @ u
    az_pre = jnp.dot(az_app, azw_ref[...], preferred_element_type=jnp.float32)

    # ---- fused LayerNorm + SiLU on the stacked (2N,H) slab ----
    pre = jnp.concatenate([d_app, az_pre], axis=0)                        # (2N,H)
    gamma = jnp.concatenate([jnp.broadcast_to(ln_ref[0:1, :], (N, H)),
                             jnp.broadcast_to(ln_ref[2:3, :], (N, H))], axis=0)
    beta = jnp.concatenate([jnp.broadcast_to(ln_ref[1:2, :], (N, H)),
                            jnp.broadcast_to(ln_ref[3:4, :], (N, H))], axis=0)

    inv_h = 1.0 / H
    s = jnp.sum(pre, axis=-1, keepdims=True)
    s2 = jnp.sum(pre * pre, axis=-1, keepdims=True)
    mean = s * inv_h
    var = s2 * inv_h - mean * mean
    nrm = (pre - mean) * jax.lax.rsqrt(var + 1e-5) * gamma + beta
    act = nrm * jax.nn.sigmoid(nrm)                                       # SiLU

    first = act[0:N, :]
    azt = act[N:N2, :] + 1e-6

    u_next = u - dt * (first + dg * azt)
    out_ref[...] = jnp.clip(u_next, -10.0, 10.0)


def update_u_with_mlp(u, edge_index, edge_attr, params):
    """Full forward in one pallas_call."""
    N, H = u.shape
    ei_ne = edge_index.astype(jnp.int32)       # (2, E): rows = [source(row), target(col)]
    ei_en = ei_ne.T                            # (E, 2)
    return pl.pallas_call(
        fused_update_kernel,
        out_shape=jax.ShapeDtypeStruct((N, H), jnp.float32),
        in_specs=[pl.BlockSpec(memory_space=VMEM)] * 10
                 + [pl.BlockSpec(memory_space=SMEM)],
        out_specs=pl.BlockSpec(memory_space=VMEM),
    )(ei_en, ei_ne, edge_attr, u,
      params["w1cat"], params["w2cat"], params["edge_bias"],
      params["weight"], params["Az_weight"], params["ln"],
      params["scalars"])


# ---------------------------------------------------------------------------
# Pure-JAX reference (mirrors the PyTorch forward) for verification
# ---------------------------------------------------------------------------
def build_forward_difference_dense(num_nodes, edge_index, delta_x, delta_z):
    row = edge_index[0]
    col = edge_index[1]
    vD = 1.0 / delta_x.reshape(-1)
    vAz = delta_z.reshape(-1)
    D = jnp.zeros((num_nodes, num_nodes), jnp.float32).at[col, row].add(vD)
    Az = jnp.zeros((num_nodes, num_nodes), jnp.float32).at[col, row].add(vAz)
    diag_D = jnp.zeros((num_nodes,), jnp.float32).at[col].add(vD)
    diag_Az = jnp.zeros((num_nodes,), jnp.float32).at[col].add(vAz)
    diag_D = diag_D + (diag_D == 0).astype(jnp.float32)
    diag_Az = diag_Az + (diag_Az == 0).astype(jnp.float32)
    return D + jnp.diag(diag_D), Az + jnp.diag(diag_Az)


def reference_forward(u, edge_index, edge_attr, p):
    hx = jnp.tanh(edge_attr @ p["w1x"] + p["b1x"])
    dx = hx @ p["w2x"] + p["b2x"] + 1e-6
    hz = jnp.tanh(edge_attr @ p["w1z"] + p["b1z"])
    dz = hz @ p["w2z"] + p["b2z"] + 1e-6
    D, Az = build_forward_difference_dense(u.shape[0], edge_index, dx, dz)

    def ln(x, g, b, eps=1e-5):
        m = jnp.mean(x, -1, keepdims=True)
        v = jnp.mean((x - m) ** 2, -1, keepdims=True)
        return (x - m) / jnp.sqrt(v + eps) * g + b

    dt, dg = p["scalars"][0], p["scalars"][1]
    uw2 = (u @ p["weight"]) ** 2
    first = jax.nn.silu(ln(D @ uw2, p["g1"], p["b1"]))
    azt = jax.nn.silu(ln((Az @ u) @ p["Az_weight"], p["g2"], p["b2"])) + 1e-6
    return jnp.clip(u - dt * (first + dg * azt), -10.0, 10.0)


# ---------------------------------------------------------------------------
# Deterministic parameter init (shapes follow the PyTorch __init__) + packing
# ---------------------------------------------------------------------------
def init_params(key, edge_attr_dim, hidden, delta_t, delta_g=0.5):
    ks = jax.random.split(key, 10)

    def linear(kw, kb, fin, fout):
        bound = 1.0 / np.sqrt(fin)
        w = jax.random.uniform(kw, (fin, fout), jnp.float32, -bound, bound)
        b = jax.random.uniform(kb, (1, fout), jnp.float32, -bound, bound)
        return w, b

    w1x, b1x = linear(ks[0], ks[1], edge_attr_dim, 16)
    w2x, b2x = linear(ks[2], ks[3], 16, 1)
    w1z, b1z = linear(ks[4], ks[5], edge_attr_dim, 16)
    w2z, b2z = linear(ks[6], ks[7], 16, 1)

    xav = np.sqrt(6.0 / (hidden + hidden))
    weight = jax.random.uniform(ks[8], (hidden, hidden), jnp.float32, -xav, xav)
    az_w = jax.random.uniform(ks[9], (hidden, hidden), jnp.float32, -xav, xav)

    g1 = jnp.ones((1, hidden), jnp.float32)
    b1 = jnp.zeros((1, hidden), jnp.float32)
    g2 = jnp.ones((1, hidden), jnp.float32)
    b2 = jnp.zeros((1, hidden), jnp.float32)

    # ---- packed versions consumed by the fused kernel ----
    w1cat = jnp.concatenate([w1x, w1z], axis=1)                       # (F, 32)
    w2cat = jnp.zeros((32, 2), jnp.float32)
    w2cat = w2cat.at[0:16, 0:1].set(w2x).at[16:32, 1:2].set(w2z)      # block-diagonal
    edge_bias = jnp.zeros((2, 32), jnp.float32)
    edge_bias = edge_bias.at[0:1, :].set(jnp.concatenate([b1x, b1z], axis=1))
    edge_bias = edge_bias.at[1, 0].set(b2x[0, 0]).at[1, 1].set(b2z[0, 0])
    ln = jnp.concatenate([g1, b1, g2, b2], axis=0)                    # (4, H)

    return dict(
        # raw params (used by the pure-JAX reference)
        w1x=w1x, b1x=b1x, w2x=w2x, b2x=b2x,
        w1z=w1z, b1z=b1z, w2z=w2z, b2z=b2z,
        weight=weight, Az_weight=az_w, g1=g1, b1=b1, g2=g2, b2=b2,
        # packed params (used by the fused kernel)
        w1cat=w1cat, w2cat=w2cat, edge_bias=edge_bias, ln=ln,
        scalars=jnp.array([delta_t, delta_g], jnp.float32),  # [delta_t, delta_g]
    )


if __name__ == "__main__":
    N = 16            # num_nodes
    H = 32            # hidden_channels == output_dim
    F = 4             # edge_attr_dim
    DELTA_T = 0.01

    key = jax.random.PRNGKey(0)
    k_u, k_attr, k_p = jax.random.split(key, 3)

    # Simple directed ring graph: edge e goes row=e -> col=(e+1) % N  (E = N)
    row = jnp.arange(N, dtype=jnp.int32)
    col = (row + 1) % N
    edge_index = jnp.stack([row, col], axis=0)                  # [2, E]
    edge_attr = jax.random.normal(k_attr, (N, F), jnp.float32)  # [E, F]
    u = jax.random.normal(k_u, (N, H), jnp.float32)             # [N, H]

    params = init_params(k_p, F, H, DELTA_T)

    out = update_u_with_mlp(u, edge_index, edge_attr, params)
    out = jax.block_until_ready(out)

    ref = jax.block_until_ready(reference_forward(u, edge_index, edge_attr, params))
    np.testing.assert_allclose(np.asarray(out), np.asarray(ref), rtol=1e-4, atol=1e-4)

    print("KERNEL_OK")
</pallas_src>

<mosaic_0001>
module attributes {stable_mosaic.version = 11 : i64} {
  func.func @fused_update_kernel(%arg0: memref<16x2xi32, #tpu.memory_space<vmem>>, %arg1: memref<2x16xi32, #tpu.memory_space<vmem>>, %arg2: memref<16x4xf32, #tpu.memory_space<vmem>>, %arg3: memref<16x32xf32, #tpu.memory_space<vmem>>, %arg4: memref<4x32xf32, #tpu.memory_space<vmem>>, %arg5: memref<32x2xf32, #tpu.memory_space<vmem>>, %arg6: memref<2x32xf32, #tpu.memory_space<vmem>>, %arg7: memref<32x32xf32, #tpu.memory_space<vmem>>, %arg8: memref<32x32xf32, #tpu.memory_space<vmem>>, %arg9: memref<4x32xf32, #tpu.memory_space<vmem>>, %arg10: memref<2xf32, #tpu.memory_space<smem>>, %arg11: memref<16x32xf32, #tpu.memory_space<vmem>>) attributes {dimension_semantics = [], scalar_prefetch = 0 : i64, scratch_operands = 0 : i64, tpu.core_type = #tpu.core_type<tc>} {
    %c0 = arith.constant 0 : index
    %c0_0 = arith.constant 0 : index
    %0 = vector.load %arg2[%c0, %c0_0] : memref<16x4xf32, #tpu.memory_space<vmem>>, vector<16x4xf32>
    %c0_1 = arith.constant 0 : index
    %c0_2 = arith.constant 0 : index
    %1 = vector.load %arg4[%c0_1, %c0_2] : memref<4x32xf32, #tpu.memory_space<vmem>>, vector<4x32xf32>
    %cst = arith.constant dense<0.000000e+00> : vector<16x32xf32>
    %2 = tpu.matmul %0, %1, %cst {dimension_numbers = #tpu.dot_dimension_numbers<[1], [0], [0], [1], [0, 0, 1, 1], [], []>} : vector<16x4xf32>, vector<4x32xf32>, vector<16x32xf32> -> vector<16x32xf32>
    %c0_3 = arith.constant 0 : index
    %c0_4 = arith.constant 0 : index
    %3 = vector.load %arg6[%c0_3, %c0_4] : memref<2x32xf32, #tpu.memory_space<vmem>>, vector<1x32xf32>
    %4 = vector.broadcast %3 : vector<1x32xf32> to vector<16x32xf32>
    %5 = arith.addf %2, %4 : vector<16x32xf32>
    %6 = math.tanh %5 : vector<16x32xf32>
    %c0_5 = arith.constant 0 : index
    %c0_6 = arith.constant 0 : index
    %7 = vector.load %arg5[%c0_5, %c0_6] : memref<32x2xf32, #tpu.memory_space<vmem>>, vector<32x2xf32>
    %cst_7 = arith.constant dense<0.000000e+00> : vector<16x2xf32>
    %8 = tpu.matmul %6, %7, %cst_7 {dimension_numbers = #tpu.dot_dimension_numbers<[1], [0], [0], [1], [0, 0, 1, 1], [], []>} : vector<16x32xf32>, vector<32x2xf32>, vector<16x2xf32> -> vector<16x2xf32>
    %c1 = arith.constant 1 : index
    %c0_8 = arith.constant 0 : index
    %9 = vector.load %arg6[%c1, %c0_8] : memref<2x32xf32, #tpu.memory_space<vmem>>, vector<1x2xf32>
    %10 = vector.broadcast %9 : vector<1x2xf32> to vector<16x2xf32>
    %11 = arith.addf %8, %10 : vector<16x2xf32>
    %cst_9 = arith.constant 9.99999997E-7 : f32
    %12 = vector.broadcast %cst_9 : f32 to vector<16x2xf32>
    %13 = arith.addf %11, %12 : vector<16x2xf32>
    %14 = vector.extract_strided_slice %13 {offsets = [0, 0], sizes = [16, 1], strides = [1, 1]} : vector<16x2xf32> to vector<16x1xf32>
    %cst_10 = arith.constant 1.000000e+00 : f32
    %15 = vector.broadcast %cst_10 : f32 to vector<16x1xf32>
    %16 = arith.divf %15, %14 : vector<16x1xf32>
    %17 = vector.extract_strided_slice %13 {offsets = [0, 1], sizes = [16, 1], strides = [1, 1]} : vector<16x2xf32> to vector<16x1xf32>
    %18 = tpu.concatenate %16, %17 in 0 : vector<16x1xf32>, vector<16x1xf32> -> vector<32x1xf32>
    %c0_11 = arith.constant 0 : index
    %c0_12 = arith.constant 0 : index
    %19 = vector.load %arg0[%c0_11, %c0_12] : memref<16x2xi32, #tpu.memory_space<vmem>>, vector<16x2xi32>
    %20 = vector.extract_strided_slice %19 {offsets = [0, 0], sizes = [16, 1], strides = [1, 1]} : vector<16x2xi32> to vector<16x1xi32>
    %c0_13 = arith.constant 0 : index
    %c0_14 = arith.constant 0 : index
    %21 = vector.load %arg1[%c0_13, %c0_14] : memref<2x16xi32, #tpu.memory_space<vmem>>, vector<2x16xi32>
    %22 = vector.extract_strided_slice %21 {offsets = [1, 0], sizes = [1, 16], strides = [1, 1]} : vector<2x16xi32> to vector<1x16xi32>
    %c16_i32 = arith.constant 16 : i32
    %23 = vector.broadcast %c16_i32 : i32 to vector<16x1xi32>
    %24 = arith.addi %20, %23 : vector<16x1xi32>
    %25 = tpu.concatenate %20, %24 in 0 : vector<16x1xi32>, vector<16x1xi32> -> vector<32x1xi32>
    %c16_i32_15 = arith.constant 16 : i32
    %26 = vector.broadcast %c16_i32_15 : i32 to vector<1x16xi32>
    %27 = arith.addi %22, %26 : vector<1x16xi32>
    %28 = tpu.concatenate %22, %27 in 1 : vector<1x16xi32>, vector<1x16xi32> -> vector<1x32xi32>
    %29 = tpu.iota {dimensions = array<i32: 1>} : vector<32x32xi32>
    %30 = vector.broadcast %25 : vector<32x1xi32> to vector<32x32xi32>
    %31 = arith.cmpi eq, %29, %30 : vector<32x32xi32>
    %32 = arith.extui %31 : vector<32x32xi1> to vector<32x32xi32>
    %33 = arith.sitofp %32 : vector<32x32xi32> to vector<32x32xf32>
    %34 = tpu.iota {dimensions = array<i32: 0>} : vector<32x32xi32>
    %35 = vector.broadcast %28 : vector<1x32xi32> to vector<32x32xi32>
    %36 = arith.cmpi eq, %34, %35 : vector<32x32xi32>
    %37 = arith.extui %36 : vector<32x32xi1> to vector<32x32xi32>
    %38 = arith.sitofp %37 : vector<32x32xi32> to vector<32x32xf32>
    %cst_16 = arith.constant dense<0.000000e+00> : vector<32x1xf32>
    %39 = tpu.matmul %38, %18, %cst_16 {dimension_numbers = #tpu.dot_dimension_numbers<[1], [0], [0], [1], [0, 0, 1, 1], [], []>} : vector<32x32xf32>, vector<32x1xf32>, vector<32x1xf32> -> vector<32x1xf32>
    %cst_17 = arith.constant 0.000000e+00 : f32
    %40 = vector.broadcast %cst_17 : f32 to vector<32x1xf32>
    %41 = arith.cmpf oeq, %39, %40 : vector<32x1xf32>
    %42 = arith.extui %41 : vector<32x1xi1> to vector<32x1xi32>
    %43 = arith.sitofp %42 : vector<32x1xi32> to vector<32x1xf32>
    %44 = arith.addf %39, %43 : vector<32x1xf32>
    %c0_18 = arith.constant 0 : index
    %45 = memref.load %arg10[%c0_18] : memref<2xf32, #tpu.memory_space<smem>>
    %c1_19 = arith.constant 1 : index
    %46 = memref.load %arg10[%c1_19] : memref<2xf32, #tpu.memory_space<smem>>
    %c0_20 = arith.constant 0 : index
    %c0_21 = arith.constant 0 : index
    %47 = vector.load %arg3[%c0_20, %c0_21] : memref<16x32xf32, #tpu.memory_space<vmem>>, vector<16x32xf32>
    %c0_22 = arith.constant 0 : index
    %c0_23 = arith.constant 0 : index
    %48 = vector.load %arg7[%c0_22, %c0_23] : memref<32x32xf32, #tpu.memory_space<vmem>>, vector<32x32xf32>
    %cst_24 = arith.constant dense<0.000000e+00> : vector<16x32xf32>
    %49 = tpu.matmul %47, %48, %cst_24 {dimension_numbers = #tpu.dot_dimension_numbers<[1], [0], [0], [1], [0, 0, 1, 1], [], []>} : vector<16x32xf32>, vector<32x32xf32>, vector<16x32xf32> -> vector<16x32xf32>
    %50 = arith.mulf %49, %49 : vector<16x32xf32>
    %51 = tpu.concatenate %50, %47 in 0 : vector<16x32xf32>, vector<16x32xf32> -> vector<32x32xf32>
    %cst_25 = arith.constant dense<0.000000e+00> : vector<32x32xf32>
    %52 = tpu.matmul %33, %51, %cst_25 {dimension_numbers = #tpu.dot_dimension_numbers<[1], [0], [0], [1], [0, 0, 1, 1], [], []>} : vector<32x32xf32>, vector<32x32xf32>, vector<32x32xf32> -> vector<32x32xf32>
    %53 = vector.broadcast %18 : vector<32x1xf32> to vector<32x32xf32>
    %54 = arith.mulf %53, %52 : vector<32x32xf32>
    %cst_26 = arith.constant dense<0.000000e+00> : vector<32x32xf32>
    %55 = tpu.matmul %38, %54, %cst_26 {dimension_numbers = #tpu.dot_dimension_numbers<[1], [0], [0], [1], [0, 0, 1, 1], [], []>} : vector<32x32xf32>, vector<32x32xf32>, vector<32x32xf32> -> vector<32x32xf32>
    %56 = vector.extract_strided_slice %55 {offsets = [0, 0], sizes = [16, 32], strides = [1, 1]} : vector<32x32xf32> to vector<16x32xf32>
    %57 = vector.extract_strided_slice %44 {offsets = [0, 0], sizes = [16, 1], strides = [1, 1]} : vector<32x1xf32> to vector<16x1xf32>
    %58 = vector.broadcast %57 : vector<16x1xf32> to vector<16x32xf32>
    %59 = arith.mulf %58, %50 : vector<16x32xf32>
    %60 = arith.addf %56, %59 : vector<16x32xf32>
    %61 = vector.extract_strided_slice %55 {offsets = [16, 0], sizes = [16, 32], strides = [1, 1]} : vector<32x32xf32> to vector<16x32xf32>
    %62 = vector.extract_strided_slice %44 {offsets = [16, 0], sizes = [16, 1], strides = [1, 1]} : vector<32x1xf32> to vector<16x1xf32>
    %63 = vector.broadcast %62 : vector<16x1xf32> to vector<16x32xf32>
    %64 = arith.mulf %63, %47 : vector<16x32xf32>
    %65 = arith.addf %61, %64 : vector<16x32xf32>
    %c0_27 = arith.constant 0 : index
    %c0_28 = arith.constant 0 : index
    %66 = vector.load %arg8[%c0_27, %c0_28] : memref<32x32xf32, #tpu.memory_space<vmem>>, vector<32x32xf32>
    %cst_29 = arith.constant dense<0.000000e+00> : vector<16x32xf32>
    %67 = tpu.matmul %65, %66, %cst_29 {dimension_numbers = #tpu.dot_dimension_numbers<[1], [0], [0], [1], [0, 0, 1, 1], [], []>} : vector<16x32xf32>, vector<32x32xf32>, vector<16x32xf32> -> vector<16x32xf32>
    %68 = tpu.concatenate %60, %67 in 0 : vector<16x32xf32>, vector<16x32xf32> -> vector<32x32xf32>
    %c0_30 = arith.constant 0 : index
    %c0_31 = arith.constant 0 : index
    %69 = vector.load %arg9[%c0_30, %c0_31] : memref<4x32xf32, #tpu.memory_space<vmem>>, vector<1x32xf32>
    %70 = vector.shape_cast %69 : vector<1x32xf32> to vector<1x32xf32>
    %71 = vector.broadcast %70 : vector<1x32xf32> to vector<16x32xf32>
    %c2 = arith.constant 2 : index
    %c0_32 = arith.constant 0 : index
    %72 = vector.load %arg9[%c2, %c0_32] : memref<4x32xf32, #tpu.memory_space<vmem>>, vector<1x32xf32>
    %73 = vector.shape_cast %72 : vector<1x32xf32> to vector<1x32xf32>
    %74 = vector.broadcast %73 : vector<1x32xf32> to vector<16x32xf32>
    %75 = tpu.concatenate %71, %74 in 0 : vector<16x32xf32>, vector<16x32xf32> -> vector<32x32xf32>
    %c1_33 = arith.constant 1 : index
    %c0_34 = arith.constant 0 : index
    %76 = vector.load %arg9[%c1_33, %c0_34] : memref<4x32xf32, #tpu.memory_space<vmem>>, vector<1x32xf32>
    %77 = vector.shape_cast %76 : vector<1x32xf32> to vector<1x32xf32>
    %78 = vector.broadcast %77 : vector<1x32xf32> to vector<16x32xf32>
    %c3 = arith.constant 3 : index
    %c0_35 = arith.constant 0 : index
    %79 = vector.load %arg9[%c3, %c0_35] : memref<4x32xf32, #tpu.memory_space<vmem>>, vector<1x32xf32>
    %80 = vector.shape_cast %79 : vector<1x32xf32> to vector<1x32xf32>
    %81 = vector.broadcast %80 : vector<1x32xf32> to vector<16x32xf32>
    %82 = tpu.concatenate %78, %81 in 0 : vector<16x32xf32>, vector<16x32xf32> -> vector<32x32xf32>
    %cst_36 = arith.constant dense<0.000000e+00> : vector<32xf32>
    %83 = vector.multi_reduction <add>, %68, %cst_36 [1] : vector<32x32xf32> to vector<32xf32>
    %84 = vector.shape_cast %83 : vector<32xf32> to vector<32x1xf32>
    %85 = arith.mulf %68, %68 : vector<32x32xf32>
    %cst_37 = arith.constant dense<0.000000e+00> : vector<32xf32>
    %86 = vector.multi_reduction <add>, %85, %cst_37 [1] : vector<32x32xf32> to vector<32xf32>
    %87 = vector.shape_cast %86 : vector<32xf32> to vector<32x1xf32>
    %cst_38 = arith.constant 3.125000e-02 : f32
    %88 = vector.broadcast %cst_38 : f32 to vector<32x1xf32>
    %89 = arith.mulf %84, %88 : vector<32x1xf32>
    %cst_39 = arith.constant 3.125000e-02 : f32
    %90 = vector.broadcast %cst_39 : f32 to vector<32x1xf32>
    %91 = arith.mulf %87, %90 : vector<32x1xf32>
    %92 = arith.mulf %89, %89 : vector<32x1xf32>
    %93 = arith.subf %91, %92 : vector<32x1xf32>
    %94 = vector.broadcast %89 : vector<32x1xf32> to vector<32x32xf32>
    %95 = arith.subf %68, %94 : vector<32x32xf32>
    %cst_40 = arith.constant 9.99999974E-6 : f32
    %96 = vector.broadcast %cst_40 : f32 to vector<32x1xf32>
    %97 = arith.addf %93, %96 : vector<32x1xf32>
    %98 = math.rsqrt %97 : vector<32x1xf32>
    %99 = vector.broadcast %98 : vector<32x1xf32> to vector<32x32xf32>
    %100 = arith.mulf %95, %99 : vector<32x32xf32>
    %101 = arith.mulf %100, %75 : vector<32x32xf32>
    %102 = arith.addf %101, %82 : vector<32x32xf32>
    %103 = arith.negf %102 : vector<32x32xf32>
    %104 = math.exp %103 : vector<32x32xf32>
    %cst_41 = arith.constant 1.000000e+00 : f32
    %105 = vector.broadcast %cst_41 : f32 to vector<32x32xf32>
    %106 = arith.addf %105, %104 : vector<32x32xf32>
    %107 = arith.divf %105, %106 : vector<32x32xf32>
    %108 = arith.mulf %102, %107 : vector<32x32xf32>
    %109 = vector.extract_strided_slice %108 {offsets = [0, 0], sizes = [16, 32], strides = [1, 1]} : vector<32x32xf32> to vector<16x32xf32>
    %110 = vector.extract_strided_slice %108 {offsets = [16, 0], sizes = [16, 32], strides = [1, 1]} : vector<32x32xf32> to vector<16x32xf32>
    %cst_42 = arith.constant 9.99999997E-7 : f32
    %111 = vector.broadcast %cst_42 : f32 to vector<16x32xf32>
    %112 = arith.addf %110, %111 : vector<16x32xf32>
    %113 = vector.broadcast %46 : f32 to vector<16x32xf32>
    %114 = arith.mulf %113, %112 : vector<16x32xf32>
    %115 = arith.addf %109, %114 : vector<16x32xf32>
    %116 = vector.broadcast %45 : f32 to vector<16x32xf32>
    %117 = arith.mulf %116, %115 : vector<16x32xf32>
    %118 = arith.subf %47, %117 : vector<16x32xf32>
    %cst_43 = arith.constant -1.000000e+01 : f32
    %cst_44 = arith.constant 1.000000e+01 : f32
    %119 = vector.broadcast %cst_43 : f32 to vector<16x32xf32>
    %120 = arith.maximumf %119, %118 : vector<16x32xf32>
    %121 = vector.broadcast %cst_44 : f32 to vector<16x32xf32>
    %122 = arith.minimumf %121, %120 : vector<16x32xf32>
    %c0_45 = arith.constant 0 : index
    %c0_46 = arith.constant 0 : index
    %123 = vector.load %arg11[%c0_45, %c0_46] : memref<16x32xf32, #tpu.memory_space<vmem>>, vector<16x32xf32>
    tpu.vector_store %arg11[%c0_45, %c0_46], %122 {strides = array<i32>} : memref<16x32xf32, #tpu.memory_space<vmem>>, vector<16x32xf32>,
    return
  }
}

</mosaic_0001>

<llo_original>
// kernel: tpu_custom_call.1
$region0: #{tpu_custom_call.1}
  #allocation0 [shape = 'u32[]', space=smem, size = 0x4, offset = 0x4, fixed_abs, tag = 'smem constant byte address 0x4 - core index']
  #allocation1 [shape = 'u32[144,128]{1,0:T(1,128)}', space=vmem, size = 0x12000, scoped, tag = 'internal scratch']
  %s0 = inlined_call_operand.vmem [shape: s32[16,2], index: 0, kind: input, shape index: {}]
  %s1 = inlined_call_operand.vmem [shape: s32[2,16], index: 1, kind: input, shape index: {}]
  %s2 = inlined_call_operand.vmem [shape: f32[16,4], index: 2, kind: input, shape index: {}]
  %s3 = inlined_call_operand.vmem [shape: f32[16,32], index: 3, kind: input, shape index: {}]
  %s4 = inlined_call_operand.vmem [shape: f32[4,32], index: 4, kind: input, shape index: {}]
  %s5 = inlined_call_operand.vmem [shape: f32[32,2], index: 5, kind: input, shape index: {}]
  %s6 = inlined_call_operand.vmem [shape: f32[2,32], index: 6, kind: input, shape index: {}]
  %s7 = inlined_call_operand.vmem [shape: f32[32,32], index: 7, kind: input, shape index: {}]
  %s8 = inlined_call_operand.vmem [shape: f32[32,32], index: 8, kind: input, shape index: {}]
  %s9 = inlined_call_operand.vmem [shape: f32[4,32], index: 9, kind: input, shape index: {}]
  %s10 = inlined_call_operand.vmem [shape: f32[2], index: 10, kind: input, shape index: {}]
  %s11 = inlined_call_operand.hbm [shape: f32[16,32], index: 11, kind: output, shape index: {}]
  %s12 = sld [smem:[#allocation0]]
  $region58: #{tpu_custom_call.1} parent=0
    _
  %s14 = ssub.s32 1, %s12
  %s15 = scalar_select 0, %s14, %s12
  $region1: #{tpu_custom_call.1} parent=0
    #allocation2 [shape = 'u8[512]{0}', space=smem, size = 0x200, scoped, tag = 'input window, operand 10, single buffered']
    #allocation3 [shape = 's32[1]{0}', space=sflag, size = 0x4, scoped, tag = 'scoped memory for tpu_custom_call.1']
    #allocation4 [shape = 's32[1]{0}', space=sflag, size = 0x4, scoped, tag = 'scoped memory for tpu_custom_call.1']
    #allocation5 [shape = 'u8[8192]{0}', space=vmem, size = 0x2000, scoped, tag = 'output window, operand 0, single buffered']
    %16 = vsyncpa [#allocation4], 0
    %17 = vsyncpa [#allocation3], 0
    // Predicated region
    $region2: #{tpu_custom_call.1} parent=1 // pred_check
      _
    $region3: #{tpu_custom_call.1} parent=1 // pred_check_branch
      %19 = sbr.rel (0) target = $region5
    $region4: #{tpu_custom_call.1} parent=1 // pred_region
      _
    $region5: #{tpu_custom_call.1} parent=1 // pred_fallthru
      _
    // Predicated region
    $region6: #{tpu_custom_call.1} parent=1 // pred_check
      _
    $region7: #{tpu_custom_call.1} parent=1 // pred_check_branch
      %21 = sbr.rel (0) target = $region9
    $region8: #{tpu_custom_call.1} parent=1 // pred_region
      _
    $region9: #{tpu_custom_call.1} parent=1 // pred_fallthru
      _
    // Predicated region
    $region10: #{tpu_custom_call.1} parent=1 // pred_check
      _
    $region11: #{tpu_custom_call.1} parent=1 // pred_check_branch
      %23 = sbr.rel (0) target = $region13
    $region12: #{tpu_custom_call.1} parent=1 // pred_region
      _
    $region13: #{tpu_custom_call.1} parent=1 // pred_fallthru
      _
    // Predicated region
    $region14: #{tpu_custom_call.1} parent=1 // pred_check
      _
    $region15: #{tpu_custom_call.1} parent=1 // pred_check_branch
      %25 = sbr.rel (0) target = $region17
    $region16: #{tpu_custom_call.1} parent=1 // pred_region
      _
    $region17: #{tpu_custom_call.1} parent=1 // pred_fallthru
      _
    // Predicated region
    $region18: #{tpu_custom_call.1} parent=1 // pred_check
      _
    $region19: #{tpu_custom_call.1} parent=1 // pred_check_branch
      %27 = sbr.rel (0) target = $region21
    $region20: #{tpu_custom_call.1} parent=1 // pred_region
      _
    $region21: #{tpu_custom_call.1} parent=1 // pred_fallthru
      _
    // Predicated region
    $region22: #{tpu_custom_call.1} parent=1 // pred_check
      _
    $region23: #{tpu_custom_call.1} parent=1 // pred_check_branch
      %29 = sbr.rel (0) target = $region25
    $region24: #{tpu_custom_call.1} parent=1 // pred_region
      _
    $region25: #{tpu_custom_call.1} parent=1 // pred_fallthru
      _
    // Predicated region
    $region26: #{tpu_custom_call.1} parent=1 // pred_check
      _
    $region27: #{tpu_custom_call.1} parent=1 // pred_check_branch
      %31 = sbr.rel (0) target = $region29
    $region28: #{tpu_custom_call.1} parent=1 // pred_region
      _
    $region29: #{tpu_custom_call.1} parent=1 // pred_fallthru
      _
    // Predicated region
    $region30: #{tpu_custom_call.1} parent=1 // pred_check
      _
    $region31: #{tpu_custom_call.1} parent=1 // pred_check_branch
      %33 = sbr.rel (0) target = $region33
    $region32: #{tpu_custom_call.1} parent=1 // pred_region
      _
    $region33: #{tpu_custom_call.1} parent=1 // pred_fallthru
      _
    // Predicated region
    $region34: #{tpu_custom_call.1} parent=1 // pred_check
      _
    $region35: #{tpu_custom_call.1} parent=1 // pred_check_branch
      %35 = sbr.rel (0) target = $region37
    $region36: #{tpu_custom_call.1} parent=1 // pred_region
      _
    $region37: #{tpu_custom_call.1} parent=1 // pred_fallthru
      _
    // Predicated region
    $region38: #{tpu_custom_call.1} parent=1 // pred_check
      _
    $region39: #{tpu_custom_call.1} parent=1 // pred_check_branch
      %37 = sbr.rel (0) target = $region41
    $region40: #{tpu_custom_call.1} parent=1 // pred_region
      _
    $region41: #{tpu_custom_call.1} parent=1 // pred_fallthru
      _
    // Predicated region
    $region42: #{tpu_custom_call.1} parent=1 // pred_check
      _
    $region43: #{tpu_custom_call.1} parent=1 // pred_check_branch
      %39 = sbr.rel (0) target = $region45
    $region44: #{tpu_custom_call.1} parent=1 // pred_region
      %s41 = ssub.s32 16, 16
      %42 = vsyncadd [#allocation4], %s41
      %s44 = sshll.u32 %s10, 4
      %s45 = int_to_ptr.vmem [resolvable:$true] %s44
      %47 = dma.vmem_to_smem %s45, 16, [#allocation2], [#allocation4]
    $region45: #{tpu_custom_call.1} parent=1 // pred_fallthru
      _
    // Predicated region
    $region46: #{tpu_custom_call.1} parent=1 // pred_check
      _
    $region47: #{tpu_custom_call.1} parent=1 // pred_check_branch
      %49 = sbr.rel (0) target = $region49
    $region48: #{tpu_custom_call.1} parent=1 // pred_region
      %50 = dma.done [#allocation4], 16
    $region49: #{tpu_custom_call.1} parent=1 // pred_fallthru
      _
    %51 = sfence
    %v52 = vld [vmem:[%s2] sm:$0xff]
    %v53 = vld [vmem:[%s2 + $0x8] sm:$0xff]
    %v54 = vld [vmem:[%s4] sm:$0xf]
    %v55 = vld [vmem:[%s6] sm:$0x1]
    %v56 = vlaneseq
    %v57 = vshrl.u32 %v56, 7
    %v58 = vsub.s32 0, %v57
    %v59 = vrot.slane %v55, %v58
    %vm60 = vcmask 31744
    %v62 = vsel %vm60, %v52, 0
    %v65 = vsel %vm60, %v53, 0
    %vm67 = vcmask 1043456
    %v69 = vsel %vm67, %v54, 0
    %71 = vmatprep.subr.mxu0 0.0
    %72 = vmatpush1.msra.mxu0 %v69
    %73 = vmatprep.subr.mxu0 0.0
    %74 = vmatpush1.msra.mxu0 0.0
    %75 = vmatprep.subr.mxu0 0.0
    %76 = vmatpush1.msra.mxu0 0.0
    %77 = vmatprep.subr.mxu0 0.0
    %78 = vmatpush1.msra.mxu0 0.0
    %79 = vmatprep.subr.mxu0 0.0
    %80 = vmatpush1.msra.mxu0 0.0
    %81 = vmatprep.subr.mxu0 0.0
    %82 = vmatpush1.msra.mxu0 0.0
    %83 = vmatprep.subr.mxu0 0.0
    %84 = vmatpush1.msra.mxu0 0.0
    %85 = vmatprep.subr.mxu0 0.0
    %86 = vmatpush1.msra.mxu0 0.0
    %87 = vmatprep.subr.mxu0 0.0
    %88 = vmatpush1.msra.mxu0 0.0
    %89 = vmatprep.subr.mxu0 0.0
    %90 = vmatpush1.msra.mxu0 0.0
    %91 = vmatprep.subr.mxu0 0.0
    %92 = vmatpush1.msra.mxu0 0.0
    %93 = vmatprep.subr.mxu0 0.0
    %94 = vmatpush1.msra.mxu0 0.0
    %95 = vmatprep.subr.mxu0 0.0
    %96 = vmatpush1.msra.mxu0 0.0
    %97 = vmatprep.subr.mxu0 0.0
    %98 = vmatpush1.msra.mxu0 0.0
    %99 = vmatprep.subr.mxu0 0.0
    %100 = vmatpush1.msra.mxu0 0.0
    %101 = vmatprep.subr.mxu0 0.0
    %102 = vmatpush1.msra.mxu0 0.0
    %103 = vmatprep.subr.mxu0 0.0
    %104 = vmatpush1.msra.mxu0 0.0
    %105 = vmatprep.subr.mxu0 0.0
    %106 = vmatpush1.msra.mxu0 0.0
    %107 = vmatprep.subr.mxu0 0.0
    %108 = vmatpush1.msra.mxu0 0.0
    %109 = vmatprep.subr.mxu0 0.0
    %110 = vmatpush1.msra.mxu0 0.0
    %111 = vmatprep.subr.mxu0 0.0
    %112 = vmatpush1.msra.mxu0 0.0
    %113 = vmatprep.subr.mxu0 0.0
    %114 = vmatpush1.msra.mxu0 0.0
    %115 = vmatprep.subr.mxu0 0.0
    %116 = vmatpush1.msra.mxu0 0.0
    %117 = vmatprep.subr.mxu0 0.0
    %118 = vmatpush1.msra.mxu0 0.0
    %119 = vmatprep.subr.mxu0 0.0
    %120 = vmatpush1.msra.mxu0 0.0
    %121 = vmatprep.subr.mxu0 0.0
    %122 = vmatpush1.msra.mxu0 0.0
    %123 = vmatprep.subr.mxu0 0.0
    %124 = vmatpush1.msra.mxu0 0.0
    %125 = vmatprep.subr.mxu0 0.0
    %126 = vmatpush1.msra.mxu0 0.0
    %127 = vmatprep.subr.mxu0 0.0
    %128 = vmatpush1.msra.mxu0 0.0
    %129 = vmatprep.subr.mxu0 0.0
    %130 = vmatpush1.msra.mxu0 0.0
    %131 = vmatprep.subr.mxu0 0.0
    %132 = vmatpush1.msra.mxu0 0.0
    %133 = vmatprep.subr.mxu0 0.0
    %134 = vmatpush1.msra.mxu0 0.0
    %135 = vmatprep.mubr.f32.mxu0 0.0
    %136 = vmatmul.mubr.f32.gmra.mrb[0].mxu0 %v62
    %v137 = vpop.f32.mrb[0].mxu0
    %v138 = vadd.f32 %v59, %v137
    %v139 = vpop.f32.mrb[0].mxu0
    %140 = vmatprep.mubr.f32.mxu0 0.0
    %141 = vmatmul.mubr.f32.gmra.mrb[0].mxu0 %v65
    %v142 = vpop.f32.mrb[0].mxu0
    %v143 = vadd.f32 %v59, %v142
    %v144 = vpop.f32.mrb[0].mxu0
    %145 = vdwg.mxu0
    %v146 = vtanh.pop %v138
    %v147 = vtanh.pop %v143
    %v148 = vld [vmem:[%s5] sm:$0xff]
    %v149 = vld [vmem:[%s5 + $0x8] sm:$0xff]
    %v150 = vld [vmem:[%s5 + $0x10] sm:$0xff]
    %v151 = vld [vmem:[%s5 + $0x18] sm:$0xff]
    %v152 = vld [vmem:[%s6 + $0x1] sm:$0x1]
    %v153 = vlaneseq
    %v154 = vshrl.u32 %v153, 7
    %v155 = vsub.s32 0, %v154
    %v156 = vrot.slane %v152, %v155
    %vm157 = vcmask 261120
    %v159 = vsel %vm157, %v146, 0
    %v162 = vsel %vm157, %v147, 0
    %164 = vmatprep.subr.mxu0 0.0
    %165 = vmatpush1.msra.mxu0 %v148
    %166 = vmatprep.subr.mxu0 0.0
    %167 = vmatpush1.msra.mxu0 %v149
    %168 = vmatprep.subr.mxu0 0.0
    %169 = vmatpush1.msra.mxu0 %v150
    %170 = vmatprep.subr.mxu0 0.0
    %171 = vmatpush1.msra.mxu0 %v151
    %172 = vmatprep.subr.mxu0 0.0
    %173 = vmatpush1.msra.mxu0 0.0
    %174 = vmatprep.subr.mxu0 0.0
    %175 = vmatpush1.msra.mxu0 0.0
    %176 = vmatprep.subr.mxu0 0.0
    %177 = vmatpush1.msra.mxu0 0.0
    %178 = vmatprep.subr.mxu0 0.0
    %179 = vmatpush1.msra.mxu0 0.0
    %180 = vmatprep.subr.mxu0 0.0
    %181 = vmatpush1.msra.mxu0 0.0
    %182 = vmatprep.subr.mxu0 0.0
    %183 = vmatpush1.msra.mxu0 0.0
    %184 = vmatprep.subr.mxu0 0.0
    %185 = vmatpush1.msra.mxu0 0.0
    %186 = vmatprep.subr.mxu0 0.0
    %187 = vmatpush1.msra.mxu0 0.0
    %188 = vmatprep.subr.mxu0 0.0
    %189 = vmatpush1.msra.mxu0 0.0
    %190 = vmatprep.subr.mxu0 0.0
    %191 = vmatpush1.msra.mxu0 0.0
    %192 = vmatprep.subr.mxu0 0.0
    %193 = vmatpush1.msra.mxu0 0.0
    %194 = vmatprep.subr.mxu0 0.0
    %195 = vmatpush1.msra.mxu0 0.0
    %196 = vmatprep.subr.mxu0 0.0
    %197 = vmatpush1.msra.mxu0 0.0
    %198 = vmatprep.subr.mxu0 0.0
    %199 = vmatpush1.msra.mxu0 0.0
    %200 = vmatprep.subr.mxu0 0.0
    %201 = vmatpush1.msra.mxu0 0.0
    %202 = vmatprep.subr.mxu0 0.0
    %203 = vmatpush1.msra.mxu0 0.0
    %204 = vmatprep.subr.mxu0 0.0
    %205 = vmatpush1.msra.mxu0 0.0
    %206 = vmatprep.subr.mxu0 0.0
    %207 = vmatpush1.msra.mxu0 0.0
    %208 = vmatprep.subr.mxu0 0.0
    %209 = vmatpush1.msra.mxu0 0.0
    %210 = vmatprep.subr.mxu0 0.0
    %211 = vmatpush1.msra.mxu0 0.0
    %212 = vmatprep.subr.mxu0 0.0
    %213 = vmatpush1.msra.mxu0 0.0
    %214 = vmatprep.subr.mxu0 0.0
    %215 = vmatpush1.msra.mxu0 0.0
    %216 = vmatprep.subr.mxu0 0.0
    %217 = vmatpush1.msra.mxu0 0.0
    %218 = vmatprep.subr.mxu0 0.0
    %219 = vmatpush1.msra.mxu0 0.0
    %220 = vmatprep.subr.mxu0 0.0
    %221 = vmatpush1.msra.mxu0 0.0
    %222 = vmatprep.subr.mxu0 0.0
    %223 = vmatpush1.msra.mxu0 0.0
    %224 = vmatprep.subr.mxu0 0.0
    %225 = vmatpush1.msra.mxu0 0.0
    %226 = vmatprep.subr.mxu0 0.0
    %227 = vmatpush1.msra.mxu0 0.0
    %228 = vmatprep.mubr.f32.mxu0 0.0
    %229 = vmatmul.mubr.f32.gmra.mrb[0].mxu0 %v159
    %v230 = vpop.f32.mrb[0].mxu0
    %v231 = vadd.f32 %v156, %v230
    %v232 = vpop.f32.mrb[0].mxu0
    %233 = vmatprep.mubr.f32.mxu0 0.0
    %234 = vmatmul.mubr.f32.gmra.mrb[0].mxu0 %v162
    %v235 = vpop.f32.mrb[0].mxu0
    %v236 = vadd.f32 %v156, %v235
    %v237 = vpop.f32.mrb[0].mxu0
    %238 = vdwg.mxu0
    %v239 = vadd.f32 %v231, 1e-06
    %v240 = vadd.f32 %v236, 1e-06
    %v241 = vrcp.pop %v239
    %v242 = vmul.f32 1.0, %v241
    %v243 = vrcp.pop %v240
    %v244 = vmul.f32 1.0, %v243
    %247 = vrot.lane.b32.xlu0 %v239, 127
    %v248 = vpop.permute.xlu0 %247
    %249 = vrot.lane.b32.xlu0 %v240, 127
    %v250 = vpop.permute.xlu0 %249
    %v253 = vld [vmem:[%s0] sm:$0xff]
    %v254 = vld [vmem:[%s0 + $0x8] sm:$0xff]
    %v255 = vld [vmem:[%s1] sm:$0x3]
    %v256 = vadd.s32 %v253, 16
    %v257 = vadd.s32 %v254, 16
    %v258 = vadd.s32 %v255, 16
    %259 = vrot.lane.b32.xlu0 %v258, 16
    %v260 = vpop.permute.xlu0 %259
    %vm261 = vcmask 130048
    %v262 = vsel %vm261, %v255, %v260
    %v263 = vlaneseq
    %v264 = vand.u32 %v263, 127
    %265 = vset.pattern.permute.xlu0 0
    %266 = vperm.xlu0 %265, %v253
    %v267 = vpop.permute.xlu0 %266
    %268 = vset.pattern.permute.xlu0 0
    %269 = vperm.xlu0 %268, %v254
    %v270 = vpop.permute.xlu0 %269
    %271 = vset.pattern.permute.xlu0 0
    %272 = vperm.xlu0 %271, %v256
    %v273 = vpop.permute.xlu0 %272
    %274 = vset.pattern.permute.xlu0 0
    %275 = vperm.xlu0 %274, %v257
    %v276 = vpop.permute.xlu0 %275
    %vm277 = vcmp.eq.s32.totalorder %v264, %v267
    %vm278 = vcmp.eq.s32.totalorder %v264, %v270
    %vm279 = vcmp.eq.s32.totalorder %v264, %v273
    %vm280 = vcmp.eq.s32.totalorder %v264, %v276
    %v281 = vsel %vm277, 1, 0
    %v282 = vsel %vm278, 1, 0
    %v283 = vsel %vm279, 1, 0
    %v284 = vsel %vm280, 1, 0
    %v285 = vcvt.s32.f32 %v281
    %v286 = vcvt.s32.f32 %v282
    %v287 = vcvt.s32.f32 %v283
    %v288 = vcvt.s32.f32 %v284
    %v289 = vlaneseq
    %v290 = vshrl.u32 %v289, 7
    %v291 = vadd.s32 %v290, 8
    %v292 = vadd.s32 %v290, 16
    %v293 = vadd.s32 %v290, 24
    %v294 = vlaneseq
    %v295 = vshrl.u32 %v294, 7
    %v296 = vsub.s32 1, %v295
    %v297 = vrot.slane %v262, %v296
    %vm298 = vcmp.eq.s32.totalorder %v290, %v297
    %vm299 = vcmp.eq.s32.totalorder %v291, %v297
    %vm300 = vcmp.eq.s32.totalorder %v292, %v297
    %vm301 = vcmp.eq.s32.totalorder %v293, %v297
    %v302 = vsel %vm298, 1, 0
    %v303 = vsel %vm299, 1, 0
    %v304 = vsel %vm300, 1, 0
    %v305 = vsel %vm301, 1, 0
    %v306 = vcvt.s32.f32 %v302
    %v307 = vcvt.s32.f32 %v303
    %v308 = vcvt.s32.f32 %v304
    %v309 = vcvt.s32.f32 %v305
    %v311 = vsel %vm157, %v306, 0
    %v314 = vsel %vm157, %v307, 0
    %v317 = vsel %vm157, %v308, 0
    %v320 = vsel %vm157, %v309, 0
    %322 = vmatprep.subr.mxu0 0.0
    %323 = vmatpush1.msra.mxu0 %v242
    %324 = vmatprep.subr.mxu0 0.0
    %325 = vmatpush1.msra.mxu0 %v244
    %326 = vmatprep.subr.mxu0 0.0
    %327 = vmatpush1.msra.mxu0 %v248
    %328 = vmatprep.subr.mxu0 0.0
    %329 = vmatpush1.msra.mxu0 %v250
    %330 = vmatprep.subr.mxu0 0.0
    %331 = vmatpush1.msra.mxu0 0.0
    %332 = vmatprep.subr.mxu0 0.0
    %333 = vmatpush1.msra.mxu0 0.0
    %334 = vmatprep.subr.mxu0 0.0
    %335 = vmatpush1.msra.mxu0 0.0
    %336 = vmatprep.subr.mxu0 0.0
    %337 = vmatpush1.msra.mxu0 0.0
    %338 = vmatprep.subr.mxu0 0.0
    %339 = vmatpush1.msra.mxu0 0.0
    %340 = vmatprep.subr.mxu0 0.0
    %341 = vmatpush1.msra.mxu0 0.0
    %342 = vmatprep.subr.mxu0 0.0
    %343 = vmatpush1.msra.mxu0 0.0
    %344 = vmatprep.subr.mxu0 0.0
    %345 = vmatpush1.msra.mxu0 0.0
    %346 = vmatprep.subr.mxu0 0.0
    %347 = vmatpush1.msra.mxu0 0.0
    %348 = vmatprep.subr.mxu0 0.0
    %349 = vmatpush1.msra.mxu0 0.0
    %350 = vmatprep.subr.mxu0 0.0
    %351 = vmatpush1.msra.mxu0 0.0
    %352 = vmatprep.subr.mxu0 0.0
    %353 = vmatpush1.msra.mxu0 0.0
    %354 = vmatprep.subr.mxu0 0.0
    %355 = vmatpush1.msra.mxu0 0.0
    %356 = vmatprep.subr.mxu0 0.0
    %357 = vmatpush1.msra.mxu0 0.0
    %358 = vmatprep.subr.mxu0 0.0
    %359 = vmatpush1.msra.mxu0 0.0
    %360 = vmatprep.subr.mxu0 0.0
    %361 = vmatpush1.msra.mxu0 0.0
    %362 = vmatprep.subr.mxu0 0.0
    %363 = vmatpush1.msra.mxu0 0.0
    %364 = vmatprep.subr.mxu0 0.0
    %365 = vmatpush1.msra.mxu0 0.0
    %366 = vmatprep.subr.mxu0 0.0
    %367 = vmatpush1.msra.mxu0 0.0
    %368 = vmatprep.subr.mxu0 0.0
    %369 = vmatpush1.msra.mxu0 0.0
    %370 = vmatprep.subr.mxu0 0.0
    %371 = vmatpush1.msra.mxu0 0.0
    %372 = vmatprep.subr.mxu0 0.0
    %373 = vmatpush1.msra.mxu0 0.0
    %374 = vmatprep.subr.mxu0 0.0
    %375 = vmatpush1.msra.mxu0 0.0
    %376 = vmatprep.subr.mxu0 0.0
    %377 = vmatpush1.msra.mxu0 0.0
    %378 = vmatprep.subr.mxu0 0.0
    %379 = vmatpush1.msra.mxu0 0.0
    %380 = vmatprep.subr.mxu0 0.0
    %381 = vmatpush1.msra.mxu0 0.0
    %382 = vmatprep.subr.mxu0 0.0
    %383 = vmatpush1.msra.mxu0 0.0
    %384 = vmatprep.subr.mxu0 0.0
    %385 = vmatpush1.msra.mxu0 0.0
    %386 = vmatprep.mubr.f32.mxu0 0.0
    %387 = vmatmul.mubr.f32.gmra.mrb[0].mxu0 %v311
    %v388 = vpop.f32.mrb[0].mxu0
    %v389 = vadd.f32 0.0, %v388
    %v390 = vpop.f32.mrb[0].mxu0
    %391 = vmatprep.mubr.f32.mxu0 0.0
    %392 = vmatmul.mubr.f32.gmra.mrb[0].mxu0 %v314
    %v393 = vpop.f32.mrb[0].mxu0
    %v394 = vadd.f32 0.0, %v393
    %v395 = vpop.f32.mrb[0].mxu0
    %396 = vmatprep.mubr.f32.mxu0 0.0
    %397 = vmatmul.mubr.f32.gmra.mrb[0].mxu0 %v317
    %v398 = vpop.f32.mrb[0].mxu0
    %v399 = vadd.f32 0.0, %v398
    %v400 = vpop.f32.mrb[0].mxu0
    %401 = vmatprep.mubr.f32.mxu0 0.0
    %402 = vmatmul.mubr.f32.gmra.mrb[0].mxu0 %v320
    %v403 = vpop.f32.mrb[0].mxu0
    %v404 = vadd.f32 0.0, %v403
    %v405 = vpop.f32.mrb[0].mxu0
    %406 = vdwg.mxu0
    %vm407 = vcmp.eq.f32.partialorder %v389, 0.0
    %vm408 = vcmp.eq.f32.partialorder %v394, 0.0
    %vm409 = vcmp.eq.f32.partialorder %v399, 0.0
    %vm410 = vcmp.eq.f32.partialorder %v404, 0.0
    %v411 = vsel %vm407, 1, 0
    %v412 = vsel %vm408, 1, 0
    %v413 = vsel %vm409, 1, 0
    %v414 = vsel %vm410, 1, 0
    %v415 = vcvt.s32.f32 %v411
    %v416 = vcvt.s32.f32 %v412
    %v417 = vcvt.s32.f32 %v413
    %v418 = vcvt.s32.f32 %v414
    %v419 = vadd.f32 %v389, %v415
    %v420 = vadd.f32 %v394, %v416
    %v421 = vadd.f32 %v399, %v417
    %v422 = vadd.f32 %v404, %v418
    %s423 = sld [smem:[#allocation2]]
    %s424 = sld [smem:[#allocation2 + $0x1]]
    %v425 = vld [vmem:[%s3] sm:$0xff]
    %v426 = vld [vmem:[%s3 + $0x8] sm:$0xff]
    %v427 = vld [vmem:[%s7] sm:$0xff]
    %v428 = vld [vmem:[%s7 + $0x8] sm:$0xff]
    %v429 = vld [vmem:[%s7 + $0x10] sm:$0xff]
    %v430 = vld [vmem:[%s7 + $0x18] sm:$0xff]
    %v432 = vsel %vm157, %v425, 0
    %v435 = vsel %vm157, %v426, 0
    %437 = vmatprep.subr.mxu0 0.0
    %438 = vmatpush1.msra.mxu0 %v427
    %439 = vmatprep.subr.mxu0 0.0
    %440 = vmatpush1.msra.mxu0 %v428
    %441 = vmatprep.subr.mxu0 0.0
    %442 = vmatpush1.msra.mxu0 %v429
    %443 = vmatprep.subr.mxu0 0.0
    %444 = vmatpush1.msra.mxu0 %v430
    %445 = vmatprep.subr.mxu0 0.0
    %446 = vmatpush1.msra.mxu0 0.0
    %447 = vmatprep.subr.mxu0 0.0
    %448 = vmatpush1.msra.mxu0 0.0
    %449 = vmatprep.subr.mxu0 0.0
    %450 = vmatpush1.msra.mxu0 0.0
    %451 = vmatprep.subr.mxu0 0.0
    %452 = vmatpush1.msra.mxu0 0.0
    %453 = vmatprep.subr.mxu0 0.0
    %454 = vmatpush1.msra.mxu0 0.0
    %455 = vmatprep.subr.mxu0 0.0
    %456 = vmatpush1.msra.mxu0 0.0
    %457 = vmatprep.subr.mxu0 0.0
    %458 = vmatpush1.msra.mxu0 0.0
    %459 = vmatprep.subr.mxu0 0.0
    %460 = vmatpush1.msra.mxu0 0.0
    %461 = vmatprep.subr.mxu0 0.0
    %462 = vmatpush1.msra.mxu0 0.0
    %463 = vmatprep.subr.mxu0 0.0
    %464 = vmatpush1.msra.mxu0 0.0
    %465 = vmatprep.subr.mxu0 0.0
    %466 = vmatpush1.msra.mxu0 0.0
    %467 = vmatprep.subr.mxu0 0.0
    %468 = vmatpush1.msra.mxu0 0.0
    %469 = vmatprep.subr.mxu0 0.0
    %470 = vmatpush1.msra.mxu0 0.0
    %471 = vmatprep.subr.mxu0 0.0
    %472 = vmatpush1.msra.mxu0 0.0
    %473 = vmatprep.subr.mxu0 0.0
    %474 = vmatpush1.msra.mxu0 0.0
    %475 = vmatprep.subr.mxu0 0.0
    %476 = vmatpush1.msra.mxu0 0.0
    %477 = vmatprep.subr.mxu0 0.0
    %478 = vmatpush1.msra.mxu0 0.0
    %479 = vmatprep.subr.mxu0 0.0
    %480 = vmatpush1.msra.mxu0 0.0
    %481 = vmatprep.subr.mxu0 0.0
    %482 = vmatpush1.msra.mxu0 0.0
    %483 = vmatprep.subr.mxu0 0.0
    %484 = vmatpush1.msra.mxu0 0.0
    %485 = vmatprep.subr.mxu0 0.0
    %486 = vmatpush1.msra.mxu0 0.0
    %487 = vmatprep.subr.mxu0 0.0
    %488 = vmatpush1.msra.mxu0 0.0
    %489 = vmatprep.subr.mxu0 0.0
    %490 = vmatpush1.msra.mxu0 0.0
    %491 = vmatprep.subr.mxu0 0.0
    %492 = vmatpush1.msra.mxu0 0.0
    %493 = vmatprep.subr.mxu0 0.0
    %494 = vmatpush1.msra.mxu0 0.0
    %495 = vmatprep.subr.mxu0 0.0
    %496 = vmatpush1.msra.mxu0 0.0
    %497 = vmatprep.subr.mxu0 0.0
    %498 = vmatpush1.msra.mxu0 0.0
    %499 = vmatprep.subr.mxu0 0.0
    %500 = vmatpush1.msra.mxu0 0.0
    %501 = vmatprep.mubr.f32.mxu0 0.0
    %502 = vmatmul.mubr.f32.gmra.mrb[0].mxu0 %v432
    %v503 = vpop.f32.mrb[0].mxu0
    %v504 = vadd.f32 0.0, %v503
    %v505 = vpop.f32.mrb[0].mxu0
    %506 = vmatprep.mubr.f32.mxu0 0.0
    %507 = vmatmul.mubr.f32.gmra.mrb[0].mxu0 %v435
    %v508 = vpop.f32.mrb[0].mxu0
    %v509 = vadd.f32 0.0, %v508
    %v510 = vpop.f32.mrb[0].mxu0
    %511 = vdwg.mxu0
    %v512 = vmul.f32 %v504, %v504
    %v513 = vmul.f32 %v509, %v509
    %v515 = vsel %vm157, %v285, 0
    %v518 = vsel %vm157, %v286, 0
    %v521 = vsel %vm157, %v287, 0
    %v524 = vsel %vm157, %v288, 0
    %526 = vmatprep.subr.mxu0 0.0
    %527 = vmatpush1.msra.mxu0 %v512
    %528 = vmatprep.subr.mxu0 0.0
    %529 = vmatpush1.msra.mxu0 %v513
    %530 = vmatprep.subr.mxu0 0.0
    %531 = vmatpush1.msra.mxu0 %v425
    %532 = vmatprep.subr.mxu0 0.0
    %533 = vmatpush1.msra.mxu0 %v426
    %534 = vmatprep.subr.mxu0 0.0
    %535 = vmatpush1.msra.mxu0 0.0
    %536 = vmatprep.subr.mxu0 0.0
    %537 = vmatpush1.msra.mxu0 0.0
    %538 = vmatprep.subr.mxu0 0.0
    %539 = vmatpush1.msra.mxu0 0.0
    %540 = vmatprep.subr.mxu0 0.0
    %541 = vmatpush1.msra.mxu0 0.0
    %542 = vmatprep.subr.mxu0 0.0
    %543 = vmatpush1.msra.mxu0 0.0
    %544 = vmatprep.subr.mxu0 0.0
    %545 = vmatpush1.msra.mxu0 0.0
    %546 = vmatprep.subr.mxu0 0.0
    %547 = vmatpush1.msra.mxu0 0.0
    %548 = vmatprep.subr.mxu0 0.0
    %549 = vmatpush1.msra.mxu0 0.0
    %550 = vmatprep.subr.mxu0 0.0
    %551 = vmatpush1.msra.mxu0 0.0
    %552 = vmatprep.subr.mxu0 0.0
    %553 = vmatpush1.msra.mxu0 0.0
    %554 = vmatprep.subr.mxu0 0.0
    %555 = vmatpush1.msra.mxu0 0.0
    %556 = vmatprep.subr.mxu0 0.0
    %557 = vmatpush1.msra.mxu0 0.0
    %558 = vmatprep.subr.mxu0 0.0
    %559 = vmatpush1.msra.mxu0 0.0
    %560 = vmatprep.subr.mxu0 0.0
    %561 = vmatpush1.msra.mxu0 0.0
    %562 = vmatprep.subr.mxu0 0.0
    %563 = vmatpush1.msra.mxu0 0.0
    %564 = vmatprep.subr.mxu0 0.0
    %565 = vmatpush1.msra.mxu0 0.0
    %566 = vmatprep.subr.mxu0 0.0
    %567 = vmatpush1.msra.mxu0 0.0
    %568 = vmatprep.subr.mxu0 0.0
    %569 = vmatpush1.msra.mxu0 0.0
    %570 = vmatprep.subr.mxu0 0.0
    %571 = vmatpush1.msra.mxu0 0.0
    %572 = vmatprep.subr.mxu0 0.0
    %573 = vmatpush1.msra.mxu0 0.0
    %574 = vmatprep.subr.mxu0 0.0
    %575 = vmatpush1.msra.mxu0 0.0
    %576 = vmatprep.subr.mxu0 0.0
    %577 = vmatpush1.msra.mxu0 0.0
    %578 = vmatprep.subr.mxu0 0.0
    %579 = vmatpush1.msra.mxu0 0.0
    %580 = vmatprep.subr.mxu0 0.0
    %581 = vmatpush1.msra.mxu0 0.0
    %582 = vmatprep.subr.mxu0 0.0
    %583 = vmatpush1.msra.mxu0 0.0
    %584 = vmatprep.subr.mxu0 0.0
    %585 = vmatpush1.msra.mxu0 0.0
    %586 = vmatprep.subr.mxu0 0.0
    %587 = vmatpush1.msra.mxu0 0.0
    %588 = vmatprep.subr.mxu0 0.0
    %589 = vmatpush1.msra.mxu0 0.0
    %590 = vmatprep.mubr.f32.mxu0 0.0
    %591 = vmatmul.mubr.f32.gmra.mrb[0].mxu0 %v515
    %v592 = vpop.f32.mrb[0].mxu0
    %v593 = vadd.f32 0.0, %v592
    %v594 = vpop.f32.mrb[0].mxu0
    %595 = vmatprep.mubr.f32.mxu0 0.0
    %596 = vmatmul.mubr.f32.gmra.mrb[0].mxu0 %v518
    %v597 = vpop.f32.mrb[0].mxu0
    %v598 = vadd.f32 0.0, %v597
    %v599 = vpop.f32.mrb[0].mxu0
    %600 = vmatprep.mubr.f32.mxu0 0.0
    %601 = vmatmul.mubr.f32.gmra.mrb[0].mxu0 %v521
    %v602 = vpop.f32.mrb[0].mxu0
    %v603 = vadd.f32 0.0, %v602
    %v604 = vpop.f32.mrb[0].mxu0
    %605 = vmatprep.mubr.f32.mxu0 0.0
    %606 = vmatmul.mubr.f32.gmra.mrb[0].mxu0 %v524
    %v607 = vpop.f32.mrb[0].mxu0
    %v608 = vadd.f32 0.0, %v607
    %v609 = vpop.f32.mrb[0].mxu0
    %610 = vdwg.mxu0
    %612 = vset.pattern.permute.xlu0 0
    %613 = vperm.xlu0 %612, %v242
    %v614 = vpop.permute.xlu0 %613
    %617 = vset.pattern.permute.xlu0 0
    %618 = vperm.xlu0 %617, %v244
    %v619 = vpop.permute.xlu0 %618
    %621 = vset.pattern.permute.xlu0 0
    %622 = vperm.xlu0 %621, %v248
    %v623 = vpop.permute.xlu0 %622
    %625 = vset.pattern.permute.xlu0 0
    %626 = vperm.xlu0 %625, %v250
    %v627 = vpop.permute.xlu0 %626
    %v629 = vmul.f32 %v614, %v593
    %v630 = vmul.f32 %v619, %v598
    %v631 = vmul.f32 %v623, %v603
    %v632 = vmul.f32 %v627, %v608
    %633 = vmatprep.subr.mxu0 0.0
    %634 = vmatpush1.msra.mxu0 %v629
    %635 = vmatprep.subr.mxu0 0.0
    %636 = vmatpush1.msra.mxu0 %v630
    %637 = vmatprep.subr.mxu0 0.0
    %638 = vmatpush1.msra.mxu0 %v631
    %639 = vmatprep.subr.mxu0 0.0
    %640 = vmatpush1.msra.mxu0 %v632
    %641 = vmatprep.subr.mxu0 0.0
    %642 = vmatpush1.msra.mxu0 0.0
    %643 = vmatprep.subr.mxu0 0.0
    %644 = vmatpush1.msra.mxu0 0.0
    %645 = vmatprep.subr.mxu0 0.0
    %646 = vmatpush1.msra.mxu0 0.0
    %647 = vmatprep.subr.mxu0 0.0
    %648 = vmatpush1.msra.mxu0 0.0
    %649 = vmatprep.subr.mxu0 0.0
    %650 = vmatpush1.msra.mxu0 0.0
    %651 = vmatprep.subr.mxu0 0.0
    %652 = vmatpush1.msra.mxu0 0.0
    %653 = vmatprep.subr.mxu0 0.0
    %654 = vmatpush1.msra.mxu0 0.0
    %655 = vmatprep.subr.mxu0 0.0
    %656 = vmatpush1.msra.mxu0 0.0
    %657 = vmatprep.subr.mxu0 0.0
    %658 = vmatpush1.msra.mxu0 0.0
    %659 = vmatprep.subr.mxu0 0.0
    %660 = vmatpush1.msra.mxu0 0.0
    %661 = vmatprep.subr.mxu0 0.0
    %662 = vmatpush1.msra.mxu0 0.0
    %663 = vmatprep.subr.mxu0 0.0
    %664 = vmatpush1.msra.mxu0 0.0
    %665 = vmatprep.subr.mxu0 0.0
    %666 = vmatpush1.msra.mxu0 0.0
    %667 = vmatprep.subr.mxu0 0.0
    %668 = vmatpush1.msra.mxu0 0.0
    %669 = vmatprep.subr.mxu0 0.0
    %670 = vmatpush1.msra.mxu0 0.0
    %671 = vmatprep.subr.mxu0 0.0
    %672 = vmatpush1.msra.mxu0 0.0
    %673 = vmatprep.subr.mxu0 0.0
    %674 = vmatpush1.msra.mxu0 0.0
    %675 = vmatprep.subr.mxu0 0.0
    %676 = vmatpush1.msra.mxu0 0.0
    %677 = vmatprep.subr.mxu0 0.0
    %678 = vmatpush1.msra.mxu0 0.0
    %679 = vmatprep.subr.mxu0 0.0
    %680 = vmatpush1.msra.mxu0 0.0
    %681 = vmatprep.subr.mxu0 0.0
    %682 = vmatpush1.msra.mxu0 0.0
    %683 = vmatprep.subr.mxu0 0.0
    %684 = vmatpush1.msra.mxu0 0.0
    %685 = vmatprep.subr.mxu0 0.0
    %686 = vmatpush1.msra.mxu0 0.0
    %687 = vmatprep.subr.mxu0 0.0
    %688 = vmatpush1.msra.mxu0 0.0
    %689 = vmatprep.subr.mxu0 0.0
    %690 = vmatpush1.msra.mxu0 0.0
    %691 = vmatprep.subr.mxu0 0.0
    %692 = vmatpush1.msra.mxu0 0.0
    %693 = vmatprep.subr.mxu0 0.0
    %694 = vmatpush1.msra.mxu0 0.0
    %695 = vmatprep.subr.mxu0 0.0
    %696 = vmatpush1.msra.mxu0 0.0
    %697 = vmatprep.mubr.f32.mxu0 0.0
    %698 = vmatmul.mubr.f32.gmra.mrb[0].mxu0 %v311
    %v699 = vpop.f32.mrb[0].mxu0
    %v700 = vadd.f32 0.0, %v699
    %v701 = vpop.f32.mrb[0].mxu0
    %702 = vmatprep.mubr.f32.mxu0 0.0
    %703 = vmatmul.mubr.f32.gmra.mrb[0].mxu0 %v314
    %v704 = vpop.f32.mrb[0].mxu0
    %v705 = vadd.f32 0.0, %v704
    %v706 = vpop.f32.mrb[0].mxu0
    %707 = vmatprep.mubr.f32.mxu0 0.0
    %708 = vmatmul.mubr.f32.gmra.mrb[0].mxu0 %v317
    %v709 = vpop.f32.mrb[0].mxu0
    %v710 = vadd.f32 0.0, %v709
    %v711 = vpop.f32.mrb[0].mxu0
    %712 = vmatprep.mubr.f32.mxu0 0.0
    %713 = vmatmul.mubr.f32.gmra.mrb[0].mxu0 %v320
    %v714 = vpop.f32.mrb[0].mxu0
    %v715 = vadd.f32 0.0, %v714
    %v716 = vpop.f32.mrb[0].mxu0
    %717 = vdwg.mxu0
    %719 = vset.pattern.permute.xlu0 0
    %720 = vperm.xlu0 %719, %v419
    %v721 = vpop.permute.xlu0 %720
    %724 = vset.pattern.permute.xlu0 0
    %725 = vperm.xlu0 %724, %v420
    %v726 = vpop.permute.xlu0 %725
    %v728 = vmul.f32 %v721, %v512
    %v729 = vmul.f32 %v726, %v513
    %v730 = vadd.f32 %v700, %v728
    %v731 = vadd.f32 %v705, %v729
    %733 = vset.pattern.permute.xlu0 0
    %734 = vperm.xlu0 %733, %v421
    %v735 = vpop.permute.xlu0 %734
    %738 = vset.pattern.permute.xlu0 0
    %739 = vperm.xlu0 %738, %v422
    %v740 = vpop.permute.xlu0 %739
    %v742 = vmul.f32 %v735, %v425
    %v743 = vmul.f32 %v740, %v426
    %v744 = vadd.f32 %v710, %v742
    %v745 = vadd.f32 %v715, %v743
    %v746 = vld [vmem:[%s8] sm:$0xff]
    %v747 = vld [vmem:[%s8 + $0x8] sm:$0xff]
    %v748 = vld [vmem:[%s8 + $0x10] sm:$0xff]
    %v749 = vld [vmem:[%s8 + $0x18] sm:$0xff]
    %v751 = vsel %vm157, %v744, 0
    %v754 = vsel %vm157, %v745, 0
    %756 = vmatprep.subr.mxu0 0.0
    %757 = vmatpush1.msra.mxu0 %v746
    %758 = vmatprep.subr.mxu0 0.0
    %759 = vmatpush1.msra.mxu0 %v747
    %760 = vmatprep.subr.mxu0 0.0
    %761 = vmatpush1.msra.mxu0 %v748
    %762 = vmatprep.subr.mxu0 0.0
    %763 = vmatpush1.msra.mxu0 %v749
    %764 = vmatprep.subr.mxu0 0.0
    %765 = vmatpush1.msra.mxu0 0.0
    %766 = vmatprep.subr.mxu0 0.0
    %767 = vmatpush1.msra.mxu0 0.0
    %768 = vmatprep.subr.mxu0 0.0
    %769 = vmatpush1.msra.mxu0 0.0
    %770 = vmatprep.subr.mxu0 0.0
    %771 = vmatpush1.msra.mxu0 0.0
    %772 = vmatprep.subr.mxu0 0.0
    %773 = vmatpush1.msra.mxu0 0.0
    %774 = vmatprep.subr.mxu0 0.0
    %775 = vmatpush1.msra.mxu0 0.0
    %776 = vmatprep.subr.mxu0 0.0
    %777 = vmatpush1.msra.mxu0 0.0
    %778 = vmatprep.subr.mxu0 0.0
    %779 = vmatpush1.msra.mxu0 0.0
    %780 = vmatprep.subr.mxu0 0.0
    %781 = vmatpush1.msra.mxu0 0.0
    %782 = vmatprep.subr.mxu0 0.0
    %783 = vmatpush1.msra.mxu0 0.0
    %784 = vmatprep.subr.mxu0 0.0
    %785 = vmatpush1.msra.mxu0 0.0
    %786 = vmatprep.subr.mxu0 0.0
    %787 = vmatpush1.msra.mxu0 0.0
    %788 = vmatprep.subr.mxu0 0.0
    %789 = vmatpush1.msra.mxu0 0.0
    %790 = vmatprep.subr.mxu0 0.0
    %791 = vmatpush1.msra.mxu0 0.0
    %792 = vmatprep.subr.mxu0 0.0
    %793 = vmatpush1.msra.mxu0 0.0
    %794 = vmatprep.subr.mxu0 0.0
    %795 = vmatpush1.msra.mxu0 0.0
    %796 = vmatprep.subr.mxu0 0.0
    %797 = vmatpush1.msra.mxu0 0.0
    %798 = vmatprep.subr.mxu0 0.0
    %799 = vmatpush1.msra.mxu0 0.0
    %800 = vmatprep.subr.mxu0 0.0
    %801 = vmatpush1.msra.mxu0 0.0
    %802 = vmatprep.subr.mxu0 0.0
    %803 = vmatpush1.msra.mxu0 0.0
    %804 = vmatprep.subr.mxu0 0.0
    %805 = vmatpush1.msra.mxu0 0.0
    %806 = vmatprep.subr.mxu0 0.0
    %807 = vmatpush1.msra.mxu0 0.0
    %808 = vmatprep.subr.mxu0 0.0
    %809 = vmatpush1.msra.mxu0 0.0
    %810 = vmatprep.subr.mxu0 0.0
    %811 = vmatpush1.msra.mxu0 0.0
    %812 = vmatprep.subr.mxu0 0.0
    %813 = vmatpush1.msra.mxu0 0.0
    %814 = vmatprep.subr.mxu0 0.0
    %815 = vmatpush1.msra.mxu0 0.0
    %816 = vmatprep.subr.mxu0 0.0
    %817 = vmatpush1.msra.mxu0 0.0
    %818 = vmatprep.subr.mxu0 0.0
    %819 = vmatpush1.msra.mxu0 0.0
    %820 = vmatprep.mubr.f32.mxu0 0.0
    %821 = vmatmul.mubr.f32.gmra.mrb[0].mxu0 %v751
    %v822 = vpop.f32.mrb[0].mxu0
    %v823 = vadd.f32 0.0, %v822
    %v824 = vpop.f32.mrb[0].mxu0
    %825 = vmatprep.mubr.f32.mxu0 0.0
    %826 = vmatmul.mubr.f32.gmra.mrb[0].mxu0 %v754
    %v827 = vpop.f32.mrb[0].mxu0
    %v828 = vadd.f32 0.0, %v827
    %v829 = vpop.f32.mrb[0].mxu0
    %830 = vdwg.mxu0
    %v831 = vld [vmem:[%s9] sm:$0x1]
    %v832 = vlaneseq
    %v833 = vshrl.u32 %v832, 7
    %v834 = vsub.s32 0, %v833
    %v835 = vrot.slane %v831, %v834
    %v836 = vld [vmem:[%s9 + $0x2] sm:$0x1]
    %v837 = vlaneseq
    %v838 = vshrl.u32 %v837, 7
    %v839 = vsub.s32 0, %v838
    %v840 = vrot.slane %v836, %v839
    %v841 = vld [vmem:[%s9 + $0x1] sm:$0x1]
    %v842 = vlaneseq
    %v843 = vshrl.u32 %v842, 7
    %v844 = vsub.s32 0, %v843
    %v845 = vrot.slane %v841, %v844
    %v846 = vld [vmem:[%s9 + $0x3] sm:$0x1]
    %v847 = vlaneseq
    %v848 = vshrl.u32 %v847, 7
    %v849 = vsub.s32 0, %v848
    %v850 = vrot.slane %v846, %v849
    %v851 = vsel %vm157, %v730, 0.0
    %852 = vadd.xlane.f32.xlu0 %v851
    %v853 = vpop.xlane.xlu0 %852
    %v854 = vsel %vm157, %v731, 0.0
    %855 = vadd.xlane.f32.xlu0 %v854
    %v856 = vpop.xlane.xlu0 %855
    %v857 = vsel %vm157, %v823, 0.0
    %858 = vadd.xlane.f32.xlu0 %v857
    %v859 = vpop.xlane.xlu0 %858
    %v860 = vsel %vm157, %v828, 0.0
    %861 = vadd.xlane.f32.xlu0 %v860
    %v862 = vpop.xlane.xlu0 %861
    %v863 = vmul.f32 %v730, %v730
    %v864 = vmul.f32 %v731, %v731
    %v865 = vmul.f32 %v823, %v823
    %v866 = vmul.f32 %v828, %v828
    %v867 = vsel %vm157, %v863, 0.0
    %868 = vadd.xlane.f32.xlu0 %v867
    %v869 = vpop.xlane.xlu0 %868
    %v870 = vsel %vm157, %v864, 0.0
    %871 = vadd.xlane.f32.xlu0 %v870
    %v872 = vpop.xlane.xlu0 %871
    %v873 = vsel %vm157, %v865, 0.0
    %874 = vadd.xlane.f32.xlu0 %v873
    %v875 = vpop.xlane.xlu0 %874
    %v876 = vsel %vm157, %v866, 0.0
    %877 = vadd.xlane.f32.xlu0 %v876
    %v878 = vpop.xlane.xlu0 %877
    %v879 = vmul.f32 %v853, 0.03125
    %v880 = vmul.f32 %v856, 0.03125
    %v881 = vmul.f32 %v859, 0.03125
    %v882 = vmul.f32 %v862, 0.03125
    %v883 = vmul.f32 %v869, 0.03125
    %v884 = vmul.f32 %v872, 0.03125
    %v885 = vmul.f32 %v875, 0.03125
    %v886 = vmul.f32 %v878, 0.03125
    %v887 = vmul.f32 %v879, %v879
    %v888 = vmul.f32 %v880, %v880
    %v889 = vmul.f32 %v881, %v881
    %v890 = vmul.f32 %v882, %v882
    %v891 = vsub.f32 %v883, %v887
    %v892 = vsub.f32 %v884, %v888
    %v893 = vsub.f32 %v885, %v889
    %v894 = vsub.f32 %v886, %v890
    %v895 = vsub.f32 %v730, %v879
    %v896 = vsub.f32 %v731, %v880
    %v897 = vsub.f32 %v823, %v881
    %v898 = vsub.f32 %v828, %v882
    %v899 = vadd.f32 %v891, 1e-05
    %v900 = vadd.f32 %v892, 1e-05
    %v901 = vadd.f32 %v893, 1e-05
    %v902 = vadd.f32 %v894, 1e-05
    %v903 = vrsqrt.pop %v899
    %v904 = vrsqrt.pop %v900
    %v905 = vrsqrt.pop %v901
    %v906 = vrsqrt.pop %v902
    %v907 = vmul.f32 %v895, %v903
    %v908 = vmul.f32 %v896, %v904
    %v909 = vmul.f32 %v897, %v905
    %v910 = vmul.f32 %v898, %v906
    %v911 = vmul.f32 %v907, %v835
    %v912 = vmul.f32 %v908, %v835
    %v913 = vmul.f32 %v909, %v840
    %v914 = vmul.f32 %v910, %v840
    %v915 = vadd.f32 %v911, %v845
    %v916 = vadd.f32 %v912, %v845
    %v917 = vadd.f32 %v913, %v850
    %v918 = vadd.f32 %v914, %v850
    %v919 = vxor.u32 %v915, 2147483648
    %v920 = vxor.u32 %v916, 2147483648
    %v921 = vxor.u32 %v917, 2147483648
    %v922 = vxor.u32 %v918, 2147483648
    %v923 = vmul.f32 %v919, 1.442695
    %v924 = vpow.pop %v923
    %v925 = vmul.f32 %v920, 1.442695
    %v926 = vpow.pop %v925
    %v927 = vmul.f32 %v921, 1.442695
    %v928 = vpow.pop %v927
    %v929 = vmul.f32 %v922, 1.442695
    %v930 = vpow.pop %v929
    %v931 = vadd.f32 %v924, 1.0
    %v932 = vadd.f32 %v926, 1.0
    %v933 = vadd.f32 %v928, 1.0
    %v934 = vadd.f32 %v930, 1.0
    %v935 = vrcp.pop %v931
    %v936 = vmul.f32 1.0, %v935
    %v937 = vrcp.pop %v932
    %v938 = vmul.f32 1.0, %v937
    %v939 = vrcp.pop %v933
    %v940 = vmul.f32 1.0, %v939
    %v941 = vrcp.pop %v934
    %v942 = vmul.f32 1.0, %v941
    %v943 = vmul.f32 %v915, %v936
    %v944 = vmul.f32 %v916, %v938
    %v945 = vmul.f32 %v917, %v940
    %v946 = vmul.f32 %v918, %v942
    %v947 = vadd.f32 %v945, 1e-06
    %v948 = vadd.f32 %v946, 1e-06
    %v949 = vstv %s424
    %v950 = vmul.f32 %v949, %v947
    %v951 = vmul.f32 %v949, %v948
    %v952 = vadd.f32 %v943, %v950
    %v953 = vadd.f32 %v944, %v951
    %v954 = vstv %s423
    %v955 = vmul.f32 %v954, %v952
    %v956 = vmul.f32 %v954, %v953
    %v957 = vsub.f32 %v425, %v955
    %v958 = vsub.f32 %v426, %v956
    %v959 = vmax.f32 %v957, -10.0
    %v960 = vmax.f32 %v958, -10.0
    %v961 = vmin.f32 %v959, 10.0
    %v962 = vmin.f32 %v960, 10.0
    %963 = vst.msk [vmem:[#allocation5] sm:$0xff] %vm157, %v961
    %964 = vst.msk [vmem:[#allocation5 + $0x8] sm:$0xff] %vm157, %v962
    // Predicated region
    $region50: #{tpu_custom_call.1} parent=1 // pred_check
      _
    $region51: #{tpu_custom_call.1} parent=1 // pred_check_branch
      %966 = sbr.rel (0) target = $region53
    $region52: #{tpu_custom_call.1} parent=1 // pred_region
      %s968 = ssub.s32 256, 256
      %969 = vsyncadd [#allocation3], %s968
      %s970 = sshll.u32 [#allocation5], 4
      %s971 = int_to_ptr.vmem [resolvable:$true] %s970
      %976 = dma.vmem_to_hbm [thread:$0]  %s971, 256, %s11, [#allocation3], 128, 128, 8
    $region53: #{tpu_custom_call.1} parent=1 // pred_fallthru
      _
    // Predicated region
    $region54: #{tpu_custom_call.1} parent=1 // pred_check
      _
    $region55: #{tpu_custom_call.1} parent=1 // pred_check_branch
      %978 = sbr.rel (0) target = $region57
    $region56: #{tpu_custom_call.1} parent=1 // pred_region
      %979 = dma.done [#allocation3], 256
    $region57: #{tpu_custom_call.1} parent=1 // pred_fallthru
      _
    %980 = vsyncpa [#allocation3], 1
    %981 = vsyncpa [#allocation4], 1

</llo_original>
